<compile_context>
chip_gen: v7x
topology: tpu7x:2x2x1
jax: 0.10.0
libtpu: 0.0.40
codegen_flags: <defaults>
</compile_context>

<pallas_src>
import functools
import math

import jax
import jax.numpy as jnp
from jax.experimental import pallas as pl
from jax.experimental.pallas import tpu as pltpu

LANE = 128
_VMEM_LIMIT = 32 * 1024 * 1024


def _round_up(x, m):
    return ((x + m - 1) // m) * m


# ----------------------------------------------------------------------------
# In-kernel helpers
# ----------------------------------------------------------------------------
_ERF_P = 0.3275911
_ERF_A1 = 0.254829592
_ERF_A2 = -0.284496736
_ERF_A3 = 1.421413741
_ERF_A4 = -1.453152027
_ERF_A5 = 1.061405429
_INV_SQRT2 = 1.0 / math.sqrt(2.0)


def _gelu_exact(x):
    """Exact (erf) GELU via the Abramowitz-Stegun 7.1.26 rational approx.
    The divide is pushed to the EUP with pl.reciprocal(approx=True)."""
    z = x * _INV_SQRT2
    az = jnp.abs(z)
    t = pl.reciprocal(1.0 + _ERF_P * az, approx=True)
    poly = t * (_ERF_A1 + t * (_ERF_A2 + t * (_ERF_A3 + t * (_ERF_A4 + t * _ERF_A5))))
    erf_abs = 1.0 - poly * jnp.exp(-az * az)
    erf = jnp.where(z >= 0.0, erf_abs, -erf_abs)
    return 0.5 * x * (1.0 + erf)


# ----------------------------------------------------------------------------
# Pallas kernels
# ----------------------------------------------------------------------------
def _lin_relu_kernel(x_ref, w_ref, b_ref, o_ref):
    y = jnp.dot(x_ref[...], w_ref[...], preferred_element_type=jnp.float32)
    y = jnp.maximum(y + b_ref[...], 0.0)
    o_ref[...] = y.astype(o_ref.dtype)


def pallas_lin_relu(x, w, b, row_tile):
    """relu(x @ w + b). x:[N,F] bf16 (N multiple of row_tile), w bf16, b f32."""
    n, f = x.shape
    c = w.shape[1]
    assert n % row_tile == 0
    return pl.pallas_call(
        _lin_relu_kernel,
        out_shape=jax.ShapeDtypeStruct((n, c), jnp.bfloat16),
        grid=(n // row_tile,),
        in_specs=[
            pl.BlockSpec((row_tile, f), lambda i: (i, 0)),
            pl.BlockSpec((f, c), lambda i: (0, 0)),
            pl.BlockSpec((1, c), lambda i: (0, 0)),
        ],
        out_specs=pl.BlockSpec((row_tile, c), lambda i: (i, 0)),
        compiler_params=pltpu.CompilerParams(
            dimension_semantics=("parallel",), vmem_limit_bytes=_VMEM_LIMIT),
    )(x, w, b)


def _kqv_kernel(x_ref, w_ref, b_ref, k_ref, q_ref, v_ref, *, c):
    y = jnp.dot(x_ref[...], w_ref[...], preferred_element_type=jnp.float32)
    y = y + b_ref[...]                               # [tm, 3c]
    # c is a multiple of 128, so these slices are lane-aligned (no relayout)
    k_ref[...] = y[:, :c].astype(k_ref.dtype)
    q_ref[...] = y[:, c:2 * c].astype(q_ref.dtype)
    v_ref[...] = y[:, 2 * c:].astype(v_ref.dtype)


def pallas_kqv(x, w, b, row_tile):
    """Fused K|Q|V projection: one matmul, three lane-dense bf16 outputs."""
    n, f = x.shape
    c3 = w.shape[1]
    c = c3 // 3
    assert n % row_tile == 0
    kernel = functools.partial(_kqv_kernel, c=c)
    return pl.pallas_call(
        kernel,
        out_shape=tuple(jax.ShapeDtypeStruct((n, c), jnp.bfloat16) for _ in range(3)),
        grid=(n // row_tile,),
        in_specs=[
            pl.BlockSpec((row_tile, f), lambda i: (i, 0)),
            pl.BlockSpec((f, c3), lambda i: (0, 0)),
            pl.BlockSpec((1, c3), lambda i: (0, 0)),
        ],
        out_specs=tuple(pl.BlockSpec((row_tile, c), lambda i: (i, 0)) for _ in range(3)),
        compiler_params=pltpu.CompilerParams(
            dimension_semantics=("parallel",), vmem_limit_bytes=_VMEM_LIMIT),
    )(x, w, b)


def _hgt_attn_kernel(q_ref, k_ref, v_ref, mask_ref, a_ref, m_ref, o_ref,
                     m_sc, l_sc, acc_sc, *, heads, dp):
    # q: [Tq, H*Dp] bf16 (dst, resident over the src axis)
    # k, v: [Tk, H*Dp] bf16 (src, streamed)
    # mask: [Tq, Tk] int8 (1 = edge), expanded to additive bias in-kernel
    # a, m: [H*Dp, H*Dp] bf16 block-diagonal relation transforms
    #       (a is pre-scaled by p_rel[h]/sqrt(d))
    j = pl.program_id(1)

    @pl.when(j == 0)
    def _():
        m_sc[...] = jnp.full_like(m_sc, -jnp.inf)
        l_sc[...] = jnp.zeros_like(l_sc)
        acc_sc[...] = jnp.zeros_like(acc_sc)

    # additive mask bias: 0.0 on edges, -1e30 elsewhere (VPU, hides under MXU)
    bias = (mask_ref[...].astype(jnp.float32) - 1.0) * 1e30       # [Tq, Tk]

    # block-diagonal relation transforms: full-width MXU matmuls
    k_rel = jnp.dot(k_ref[...], a_ref[...], preferred_element_type=jnp.float32)
    v_rel = jnp.dot(v_ref[...], m_ref[...], preferred_element_type=jnp.float32)

    q = q_ref[...]
    for h in range(heads):                          # static; Dp lane-aligned slices
        sl = slice(h * dp, (h + 1) * dp)
        s = jax.lax.dot_general(
            q[:, sl], k_rel[:, sl].astype(jnp.bfloat16),
            (((1,), (1,)), ((), ())), preferred_element_type=jnp.float32)  # [Tq,Tk]
        s = s + bias
        m_prev = m_sc[h]                                            # [Tq, 1]
        m_new = jnp.maximum(m_prev, jnp.max(s, axis=-1, keepdims=True))
        corr = jnp.exp(m_prev - m_new)
        p = jnp.exp(s - m_new)
        l_sc[h] = corr * l_sc[h] + jnp.sum(p, axis=-1, keepdims=True)
        pv = jnp.dot(p.astype(jnp.bfloat16), v_rel[:, sl].astype(jnp.bfloat16),
                     preferred_element_type=jnp.float32)             # [Tq, Dp]
        acc_sc[:, sl] = corr * acc_sc[:, sl] + pv
        m_sc[h] = m_new

    @pl.when(j == pl.num_programs(1) - 1)
    def _():
        for h in range(heads):
            sl = slice(h * dp, (h + 1) * dp)
            has_edge = m_sc[h] > -1e29              # dst rows with >=1 incoming edge
            inv = pl.reciprocal(l_sc[h], approx=True)
            out_h = jnp.where(has_edge, acc_sc[:, sl] * inv, 0.0)
            o_ref[:, sl] = out_h.astype(o_ref.dtype)


def pallas_hgt_attention(q, k, v, mask, a_bd, m_bd, heads, dp, dst_tile,
                         src_tile=512):
    """Fused HGT propagate: relation transforms + masked online softmax + alpha@V.

    Grid = (dst_tiles [parallel], src_tiles [arbitrary]); k/v/mask stream in
    src_tile chunks so VMEM stays bounded for large graphs."""
    nd, hp = q.shape
    ns = k.shape[0]
    if ns > src_tile:
        ns_p = _round_up(ns, src_tile)
        if ns_p != ns:                               # neutral padding (mask=0)
            k = jnp.pad(k, ((0, ns_p - ns), (0, 0)))
            v = jnp.pad(v, ((0, ns_p - ns), (0, 0)))
            mask = jnp.pad(mask, ((0, 0), (0, ns_p - ns)))
        tk = src_tile
    else:
        ns_p, tk = ns, ns
    tq = dst_tile
    assert nd % tq == 0 and ns_p % tk == 0
    gi, gj = nd // tq, ns_p // tk

    kernel = functools.partial(_hgt_attn_kernel, heads=heads, dp=dp)
    cost = pl.CostEstimate(
        flops=int(gi * gj * (4 * tk * hp * hp + 4 * tq * tk * hp)),
        transcendentals=int(gi * gj * heads * tq * tk),
        bytes_accessed=int(2 * nd * hp * 2 + gi * ns_p * hp * 2 * 2
                           + nd * ns_p + 2 * hp * hp * 2))
    # TODO(synk): for very large / sparse graphs replace the dense int8 mask
    # with a block-sparse representation via PrefetchScalarGridSpec.
    return pl.pallas_call(
        kernel,
        out_shape=jax.ShapeDtypeStruct((nd, hp), jnp.bfloat16),
        grid=(gi, gj),
        in_specs=[
            pl.BlockSpec((tq, hp), lambda i, j: (i, 0)),   # q (resident over j)
            pl.BlockSpec((tk, hp), lambda i, j: (j, 0)),   # k (streamed)
            pl.BlockSpec((tk, hp), lambda i, j: (j, 0)),   # v (streamed)
            pl.BlockSpec((tq, tk), lambda i, j: (i, j)),   # int8 mask (streamed)
            pl.BlockSpec((hp, hp), lambda i, j: (0, 0)),   # block-diag a_rel
            pl.BlockSpec((hp, hp), lambda i, j: (0, 0)),   # block-diag m_rel
        ],
        out_specs=pl.BlockSpec((tq, hp), lambda i, j: (i, 0)),
        scratch_shapes=[
            pltpu.VMEM((heads, tq, 1), jnp.float32),   # running max
            pltpu.VMEM((heads, tq, 1), jnp.float32),   # running denominator
            pltpu.VMEM((tq, hp), jnp.float32),         # running numerator
        ],
        compiler_params=pltpu.CompilerParams(
            dimension_semantics=("parallel", "arbitrary"),
            vmem_limit_bytes=_VMEM_LIMIT),
        cost_estimate=cost,
    )(q, k, v, mask, a_bd, m_bd)


def _epilogue_kernel(*refs, n_msgs, post_relu, add_residual):
    msg_refs = refs[:n_msgs]
    w_ref, b_ref, gate_ref, x_ref = refs[n_msgs:n_msgs + 4]
    if add_residual:
        res_ref, o_ref = refs[n_msgs + 4], refs[n_msgs + 5]
    else:
        res_ref, o_ref = None, refs[n_msgs + 4]

    msg = msg_refs[0][...].astype(jnp.float32)
    for r in msg_refs[1:]:                           # fused group='sum'
        msg = msg + r[...].astype(jnp.float32)
    g = _gelu_exact(msg)
    y = jnp.dot(g.astype(jnp.bfloat16), w_ref[...],
                preferred_element_type=jnp.float32) + b_ref[...]     # a_lin
    a = gate_ref[...]                                # [1, C] = sigmoid(skip)
    y = a * y + (1.0 - a) * x_ref[...].astype(jnp.float32)
    if post_relu:
        y = jnp.maximum(y, 0.0)                      # inter-layer ReLU
    if add_residual:
        y = y + res_ref[...].astype(jnp.float32)     # final model residual
    o_ref[...] = y.astype(o_ref.dtype)


def pallas_epilogue(msgs, w, b, gate, x, residual, post_relu, row_tile):
    """Fused: sum(msgs) -> GELU -> a_lin -> skip gate (-> ReLU) (-> residual)."""
    n, c = msgs[0].shape
    n_msgs = len(msgs)
    add_residual = residual is not None
    assert n % row_tile == 0
    kernel = functools.partial(_epilogue_kernel, n_msgs=n_msgs,
                               post_relu=post_relu, add_residual=add_residual)
    inputs = list(msgs) + [w, b, gate, x]
    in_specs = [pl.BlockSpec((row_tile, c), lambda i: (i, 0)) for _ in range(n_msgs)]
    in_specs += [
        pl.BlockSpec((c, c), lambda i: (0, 0)),
        pl.BlockSpec((1, c), lambda i: (0, 0)),
        pl.BlockSpec((1, c), lambda i: (0, 0)),
        pl.BlockSpec((row_tile, c), lambda i: (i, 0)),
    ]
    if add_residual:
        inputs.append(residual)
        in_specs.append(pl.BlockSpec((row_tile, c), lambda i: (i, 0)))
    cost = pl.CostEstimate(
        flops=int(2 * n * c * c + 40 * n * c),
        transcendentals=int(3 * n * c),
        bytes_accessed=int((n_msgs + 2 + int(add_residual)) * n * c * 2 + c * c * 2))
    return pl.pallas_call(
        kernel,
        out_shape=jax.ShapeDtypeStruct((n, c), jnp.bfloat16),
        grid=(n // row_tile,),
        in_specs=in_specs,
        out_specs=pl.BlockSpec((row_tile, c), lambda i: (i, 0)),
        compiler_params=pltpu.CompilerParams(
            dimension_semantics=("parallel",), vmem_limit_bytes=_VMEM_LIMIT),
        cost_estimate=cost,
    )(*inputs)


# ----------------------------------------------------------------------------
# Parameter initialisation (deterministic, synthetic, logical sizes)
# ----------------------------------------------------------------------------
def init_linear(key, fan_in, fan_out):
    bound = 1.0 / math.sqrt(fan_in)
    w = jax.random.uniform(key, (fan_in, fan_out), jnp.float32, -bound, bound)
    b = jnp.zeros((fan_out,), jnp.float32)
    return w, b


def init_hgt_conv(key, hidden, heads, node_types, edge_types):
    d = hidden // heads
    keys = iter(jax.random.split(key, 4 * len(node_types) + 2 * len(edge_types)))
    p = {"k_w": {}, "k_b": {}, "q_w": {}, "q_b": {}, "v_w": {}, "v_b": {},
         "alin_w": {}, "alin_b": {}, "skip": {},
         "a_rel": {}, "m_rel": {}, "p_rel": {}}
    for nt in node_types:
        for nm in ("k", "q", "v"):
            w, b = init_linear(next(keys), hidden, hidden)
            p[nm + "_w"][nt], p[nm + "_b"][nt] = w, b
        w, b = init_linear(next(keys), hidden, hidden)
        p["alin_w"][nt], p["alin_b"][nt] = w, b
        p["skip"][nt] = jnp.array(1.0, jnp.float32)
    glorot = math.sqrt(6.0 / (d + d))
    for et in edge_types:
        name = "__".join(et)
        p["a_rel"][name] = jax.random.uniform(next(keys), (heads, d, d),
                                              jnp.float32, -glorot, glorot)
        p["m_rel"][name] = jax.random.uniform(next(keys), (heads, d, d),
                                              jnp.float32, -glorot, glorot)
        p["p_rel"][name] = jnp.ones((heads,), jnp.float32)
    return p


def init_model(key, in_dims, hidden, heads, num_layers, node_types, edge_types):
    keys = jax.random.split(key, len(node_types) + num_layers)
    ki = 0
    params = {"lin": {}, "convs": []}
    for nt in node_types:
        params["lin"][nt] = init_linear(keys[ki], in_dims[nt], hidden)
        ki += 1
    for _ in range(num_layers):
        params["convs"].append(
            init_hgt_conv(keys[ki], hidden, heads, node_types, edge_types))
        ki += 1
    return params


# ----------------------------------------------------------------------------
# Host-side one-time parameter preparation: zero-pad head dim to 128 lanes,
# fold p_rel/sqrt(d) into a block-diagonal a_rel, pre-cast weights to bf16,
# pre-broadcast gate rows.
# ----------------------------------------------------------------------------
def _block_diag_pad(mats, dp):
    h, d, _ = mats.shape
    out = jnp.zeros((h * dp, h * dp), mats.dtype)
    for i in range(h):
        out = out.at[i * dp:i * dp + d, i * dp:i * dp + d].set(mats[i])
    return out


def prepare_params(params, node_types, edge_types, hidden, heads, dp):
    d = hidden // heads
    hp = heads * dp
    dev = {"lin_w": {}, "lin_b": {}, "convs": []}
    for nt in node_types:
        w, b = params["lin"][nt]
        dev["lin_w"][nt] = jnp.pad(w, ((0, 0), (0, hp - hidden))).astype(jnp.bfloat16)
        dev["lin_b"][nt] = jnp.pad(b, (0, hp - hidden)).reshape(1, hp).astype(jnp.float32)
    for conv in params["convs"]:
        c = {"kqv_w": {}, "kqv_b": {}, "alin_w": {}, "alin_b": {}, "gate": {},
             "a_rel_bd": {}, "m_rel_bd": {}}
        for nt in node_types:
            ws, bs = [], []
            for nm in ("k", "q", "v"):
                wp = jnp.zeros((hp, hp), jnp.float32).at[:hidden, :hidden].set(conv[nm + "_w"][nt])
                bp = jnp.zeros((hp,), jnp.float32).at[:hidden].set(conv[nm + "_b"][nt])
                ws.append(wp)
                bs.append(bp)
            c["kqv_w"][nt] = jnp.concatenate(ws, axis=1).astype(jnp.bfloat16)
            c["kqv_b"][nt] = jnp.concatenate(bs).reshape(1, 3 * hp).astype(jnp.float32)
            c["alin_w"][nt] = (jnp.zeros((hp, hp), jnp.float32)
                               .at[:hidden, :hidden].set(conv["alin_w"][nt])
                               .astype(jnp.bfloat16))
            c["alin_b"][nt] = (jnp.zeros((1, hp), jnp.float32)
                               .at[0, :hidden].set(conv["alin_b"][nt]))
            c["gate"][nt] = jnp.full((1, hp), jax.nn.sigmoid(conv["skip"][nt]),
                                     jnp.float32)
        for et in edge_types:
            name = "__".join(et)
            a = conv["a_rel"][name] * (conv["p_rel"][name][:, None, None] / math.sqrt(d))
            c["a_rel_bd"][name] = _block_diag_pad(a, dp).astype(jnp.bfloat16)
            c["m_rel_bd"][name] = _block_diag_pad(conv["m_rel"][name], dp).astype(jnp.bfloat16)
        dev["convs"].append(c)
    return dev


# ----------------------------------------------------------------------------
# Model forward (all node-row counts pre-padded to a multiple of row_tile)
# ----------------------------------------------------------------------------
def hgt_conv_forward(p, x_dict, mask_dict, node_types, edge_types, heads, dp,
                     row_tile, post_relu, residual_dict=None):
    # Fused K/Q/V projection: one kernel per node type, three bf16 outputs.
    kqv = {nt: pallas_kqv(x_dict[nt], p["kqv_w"][nt], p["kqv_b"][nt], row_tile)
           for nt in node_types}

    out_msgs = {nt: [] for nt in node_types}
    for et in edge_types:
        src, _, dst = et
        name = "__".join(et)
        k_src, _, v_src = kqv[src]
        _, q_dst, _ = kqv[dst]
        msg = pallas_hgt_attention(q_dst, k_src, v_src, mask_dict[et],
                                   p["a_rel_bd"][name], p["m_rel_bd"][name],
                                   heads, dp, row_tile)
        out_msgs[dst].append(msg)

    new_x = {}
    for nt in node_types:
        msgs = out_msgs[nt]
        res = residual_dict[nt] if residual_dict is not None else None
        if not msgs:
            # TODO(synk): PyG HGTConv returns None for node types with no
            # incoming edges; here we pass features through unchanged.
            y = x_dict[nt].astype(jnp.float32)
            if post_relu:
                y = jnp.maximum(y, 0.0)
            if res is not None:
                y = y + res.astype(jnp.float32)
            new_x[nt] = y.astype(jnp.bfloat16)
            continue
        # Fused epilogue: message sum + GELU + a_lin + skip gate (+ReLU/+res).
        new_x[nt] = pallas_epilogue(msgs, p["alin_w"][nt], p["alin_b"][nt],
                                    p["gate"][nt], x_dict[nt], res,
                                    post_relu, row_tile)
    return new_x


def hetero_caselink_forward(dev, x_dict_in, mask_dict, node_types, edge_types,
                            heads, dp, num_layers, row_tile):
    x = {nt: pallas_lin_relu(x_dict_in[nt], dev["lin_w"][nt], dev["lin_b"][nt],
                             row_tile)
         for nt in node_types}
    residual = dict(x)   # PyTorch aliasing: residual == post-projection ReLU feats
    for li in range(num_layers):
        last = (li + 1 == num_layers)
        x = hgt_conv_forward(dev["convs"][li], x, mask_dict, node_types,
                             edge_types, heads, dp, row_tile,
                             post_relu=not last,
                             residual_dict=residual if last else None)
    return x


# ----------------------------------------------------------------------------
# Example run
# ----------------------------------------------------------------------------
def edges_to_mask(edge_index, n_src_pad, n_dst_pad):
    """int8 adjacency mask: 1 where an edge src->dst exists, 0 elsewhere."""
    src, dst = edge_index[0], edge_index[1]
    return jnp.zeros((n_dst_pad, n_src_pad), jnp.int8).at[dst, src].set(1)


if __name__ == "__main__":
    hidden = 32
    heads = 1
    num_layers = 2
    dp = _round_up(hidden // heads, LANE)   # padded per-head dim -> lane-dense
    hp = heads * dp
    row_tile = 32                           # demo tile; use 256 for real graphs

    node_types = ["case", "charge"]
    edge_types = [("case", "cites", "case"),
                  ("case", "has_charge", "charge"),
                  ("charge", "charged_in", "case")]
    n_nodes = {"case": 48, "charge": 40}
    in_dims = {"case": 48, "charge": 40}
    n_pad = {nt: _round_up(n, row_tile) for nt, n in n_nodes.items()}

    key = jax.random.PRNGKey(0)
    k_fc, k_fg, k_e1, k_e2, k_e3, k_param = jax.random.split(key, 6)

    x_raw = {
        "case": jax.random.normal(k_fc, (n_nodes["case"], in_dims["case"]), jnp.float32),
        "charge": jax.random.normal(k_fg, (n_nodes["charge"], in_dims["charge"]), jnp.float32),
    }
    # Pad node rows once; padded src rows are masked out, padded dst rows are
    # sliced off at the end.
    x_dict_in = {
        nt: jnp.pad(x_raw[nt].astype(jnp.bfloat16),
                    ((0, n_pad[nt] - n_nodes[nt]), (0, 0)))
        for nt in node_types
    }

    def rand_edges(k, n_src, n_dst, n_e):
        ks, kd = jax.random.split(k)
        src = jax.random.randint(ks, (n_e,), 0, n_src)
        dst = jax.random.randint(kd, (n_e,), 0, n_dst)
        return jnp.stack([src, dst], axis=0)

    edge_index_dict = {
        edge_types[0]: rand_edges(k_e1, n_nodes["case"], n_nodes["case"], 96),
        edge_types[1]: rand_edges(k_e2, n_nodes["case"], n_nodes["charge"], 64),
        edge_types[2]: rand_edges(k_e3, n_nodes["charge"], n_nodes["case"], 64),
    }
    mask_dict = {
        et: edges_to_mask(ei, n_pad[et[0]], n_pad[et[2]])
        for et, ei in edge_index_dict.items()
    }

    params = init_model(k_param, in_dims, hidden, heads, num_layers,
                        node_types, edge_types)
    dev_params = prepare_params(params, node_types, edge_types, hidden, heads, dp)

    out_pad = hetero_caselink_forward(dev_params, x_dict_in, mask_dict,
                                      node_types, edge_types, heads, dp,
                                      num_layers, row_tile)
    out_pad = jax.tree_util.tree_map(jax.block_until_ready, out_pad)

    # Strip row/channel padding back to the logical model shapes.
    out = {nt: out_pad[nt][:n_nodes[nt], :hidden].astype(jnp.float32)
           for nt in node_types}

    assert out["case"].shape == (n_nodes["case"], hidden)
    assert out["charge"].shape == (n_nodes["charge"], hidden)
    assert all(bool(jnp.all(jnp.isfinite(v))) for v in out.values())
    print("KERNEL_OK")
</pallas_src>

<mosaic_0001>
module attributes {stable_mosaic.version = 11 : i64} {
  func.func @_lin_relu_kernel(%arg0: i32, %arg1: memref<32x48xbf16, #tpu.memory_space<vmem>>, %arg2: memref<48x128xbf16, #tpu.memory_space<vmem>>, %arg3: memref<1x128xf32, #tpu.memory_space<vmem>>, %arg4: memref<32x128xbf16, #tpu.memory_space<vmem>>) attributes {dimension_semantics = [#tpu.dimension_semantics<parallel>], iteration_bounds = array<i64: 2>, scalar_prefetch = 0 : i64, scratch_operands = 0 : i64, tpu.core_type = #tpu.core_type<tc>, window_params = [{transform_indices = @transform_0, window_bounds = array<i64: 32, 48>}, {pipeline_mode = #tpu.pipeline_mode<synchronous>, transform_indices = @transform_1, window_bounds = array<i64: 48, 128>}, {pipeline_mode = #tpu.pipeline_mode<synchronous>, transform_indices = @transform_2, window_bounds = array<i64: 1, 128>}, {transform_indices = @transform_3, window_bounds = array<i64: 32, 128>}]} {
    %c0 = arith.constant 0 : index
    %c0_0 = arith.constant 0 : index
    %0 = vector.load %arg1[%c0, %c0_0] : memref<32x48xbf16, #tpu.memory_space<vmem>>, vector<32x48xbf16>
    %c0_1 = arith.constant 0 : index
    %c0_2 = arith.constant 0 : index
    %1 = vector.load %arg2[%c0_1, %c0_2] : memref<48x128xbf16, #tpu.memory_space<vmem>>, vector<48x128xbf16>
    %cst = arith.constant dense<0.000000e+00> : vector<32x128xf32>
    %2 = tpu.matmul %0, %1, %cst {dimension_numbers = #tpu.dot_dimension_numbers<[1], [0], [0], [1], [0, 0, 1, 1], [], []>} : vector<32x48xbf16>, vector<48x128xbf16>, vector<32x128xf32> -> vector<32x128xf32>
    %c0_3 = arith.constant 0 : index
    %c0_4 = arith.constant 0 : index
    %3 = vector.load %arg3[%c0_3, %c0_4] : memref<1x128xf32, #tpu.memory_space<vmem>>, vector<1x128xf32>
    %4 = vector.broadcast %3 : vector<1x128xf32> to vector<32x128xf32>
    %5 = arith.addf %2, %4 : vector<32x128xf32>
    %cst_5 = arith.constant 0.000000e+00 : f32
    %6 = vector.broadcast %cst_5 : f32 to vector<32x128xf32>
    %7 = arith.maximumf %5, %6 : vector<32x128xf32>
    %8 = arith.truncf %7 : vector<32x128xf32> to vector<32x128xbf16>
    %c0_6 = arith.constant 0 : index
    %c0_7 = arith.constant 0 : index
    %9 = vector.load %arg4[%c0_6, %c0_7] : memref<32x128xbf16, #tpu.memory_space<vmem>>, vector<32x128xbf16>
    tpu.vector_store %arg4[%c0_6, %c0_7], %8 {strides = array<i32>} : memref<32x128xbf16, #tpu.memory_space<vmem>>, vector<32x128xbf16>,
    return
  }
  func.func @transform_0(%arg0: i32) -> (i32, i32) {
    %c0_i32 = arith.constant 0 : i32
    %c0_i32_0 = arith.constant 0 : i32
    return %arg0, %c0_i32 : i32, i32
  }
  func.func @transform_1(%arg0: i32) -> (i32, i32) {
    %c0_i32 = arith.constant 0 : i32
    %c0_i32_0 = arith.constant 0 : i32
    %c0_i32_1 = arith.constant 0 : i32
    return %c0_i32, %c0_i32_0 : i32, i32
  }
  func.func @transform_2(%arg0: i32) -> (i32, i32) {
    %c0_i32 = arith.constant 0 : i32
    %c0_i32_0 = arith.constant 0 : i32
    %c0_i32_1 = arith.constant 0 : i32
    return %c0_i32, %c0_i32_0 : i32, i32
  }
  func.func @transform_3(%arg0: i32) -> (i32, i32) {
    %c0_i32 = arith.constant 0 : i32
    %c0_i32_0 = arith.constant 0 : i32
    return %arg0, %c0_i32 : i32, i32
  }
}

</mosaic_0001>

<llo_original>
// kernel: tpu_custom_call.1
$region0: #{tpu_custom_call.1}
  #allocation0 [shape = 'u32[]', space=smem, size = 0x4, offset = 0x4, fixed_abs, tag = 'smem constant byte address 0x4 - core index']
  #allocation1 [shape = 'u32[144,128]{1,0:T(1,128)}', space=vmem, size = 0x12000, scoped, tag = 'internal scratch']
  %s0 = inlined_call_operand.vmem [shape: bf16[64,48], index: 0, kind: input, shape index: {}]
  %s1 = inlined_call_operand.vmem [shape: bf16[48,128], index: 1, kind: input, shape index: {}]
  %s2 = inlined_call_operand.vmem [shape: f32[1,128], index: 2, kind: input, shape index: {}]
  %s3 = inlined_call_operand.hbm [shape: bf16[64,128], index: 3, kind: output, shape index: {}]
  %s4 = sld [smem:[#allocation0]]
  $region45: #{tpu_custom_call.1} parent=0
    _
  %s6 = ssub.s32 1, %s4
  %s7 = scalar_select 0, %s6, %s4
  $region1: #{tpu_custom_call.1} parent=0
    #allocation2 [shape = 'u8[16384]{0}', space=vmem, size = 0x4000, scoped, tag = 'output window, operand 0']
    #allocation3 [shape = 's32[2]{0}', space=sflag, size = 0x8, scoped, tag = 'scoped memory for tpu_custom_call.1']
    %8 = vsyncpa [#allocation3], 0
    %s9 = scalar_lea.sflag [#allocation3], 1
    %10 = vsyncpa %s9, 0
    loop: start=0, step=1, limit=4
    $region2: #{tpu_custom_call.1} parent=1 // loop_pre_header
      _
    $region3: #{tpu_custom_call.1} parent=1 // loop_header
      %s12 = sphi 0, %s16
      %p13 = scmp.ge.s32.totalorder %s12, 4
      %s22 = sphi 0, %s24
      %s25 = sphi 0, %s22
      %s26 = sphi 0, %s25
      %s42 = sphi 0, %s26
      %s46 = sphi 0, %s46
      %s48 = sphi 0, %s46
      %s49 = sphi 0, %s48
      %s63 = sphi 0, %s49
      %s67 = sphi 0, %s67
      %s69 = sphi 0, %s67
      %s70 = sphi 0, %s69
      %s84 = sphi 0, %s70
      %s90 = sphi 0, %s92
      %s93 = sphi 0, %s90
      %s94 = sphi 0, %s93
      %s110 = sphi 0, %s94
    $region4: #{tpu_custom_call.1} parent=1 // loop_header_branch
      %15 = sbr.rel (%p13) target = $region8
    $region5: #{tpu_custom_call.1} parent=1 // loop_body
      %s17 = ssub.s32 %s12, 1
      %s18 = ssub.s32 %s12, 2
      %s19 = sadd.s32 %s12, 1
      %s20 = ssub.s32 %s12, %s19
      %p21 = scmp.eq.s32.totalorder %s20, 0
      %s23 = sadd.s32 %s22, 1
      %s24 = scalar_select %p21, %s22, %s23
      %p27 = pneg %p21
      %p28 = scmp.eq.s32.totalorder %s12, 1
      %p29 = por %p27, %p28
      %p30 = scmp.ne.s32.totalorder %s22, %s25
      %p31 = scmp.eq.s32.totalorder %s12, 0
      %p32 = por %p30, %p31
      %p33 = scmp.ne.s32.totalorder %s22, %s25
      %p34 = scmp.eq.s32.totalorder %s17, 1
      %p35 = por %p33, %p34
      %p36 = scmp.ne.s32.totalorder %s25, %s26
      %p37 = scmp.eq.s32.totalorder %s17, 0
      %p38 = por %p36, %p37
      %p39 = scmp.ne.s32.totalorder %s25, %s26
      %p40 = scmp.eq.s32.totalorder %s18, 1
      %p41 = por %p39, %p40
      %p43 = scmp.ne.s32.totalorder %s26, %s42
      %p44 = scmp.eq.s32.totalorder %s18, 0
      %p45 = por %p43, %p44
      %s47 = sadd.s32 %s46, 1
      %p50 = scmp.eq.s32.totalorder %s12, 1
      %p51 = scmp.ne.s32.totalorder %s46, %s48
      %p52 = scmp.eq.s32.totalorder %s12, 0
      %p53 = por %p51, %p52
      %p54 = scmp.ne.s32.totalorder %s46, %s48
      %p55 = scmp.eq.s32.totalorder %s17, 1
      %p56 = por %p54, %p55
      %p57 = scmp.ne.s32.totalorder %s48, %s49
      %p58 = scmp.eq.s32.totalorder %s17, 0
      %p59 = por %p57, %p58
      %p60 = scmp.ne.s32.totalorder %s48, %s49
      %p61 = scmp.eq.s32.totalorder %s18, 1
      %p62 = por %p60, %p61
      %p64 = scmp.ne.s32.totalorder %s49, %s63
      %p65 = scmp.eq.s32.totalorder %s18, 0
      %p66 = por %p64, %p65
      %s68 = sadd.s32 %s67, 1
      %p71 = scmp.eq.s32.totalorder %s12, 1
      %p72 = scmp.ne.s32.totalorder %s67, %s69
      %p73 = scmp.eq.s32.totalorder %s12, 0
      %p74 = por %p72, %p73
      %p75 = scmp.ne.s32.totalorder %s67, %s69
      %p76 = scmp.eq.s32.totalorder %s17, 1
      %p77 = por %p75, %p76
      %p78 = scmp.ne.s32.totalorder %s69, %s70
      %p79 = scmp.eq.s32.totalorder %s17, 0
      %p80 = por %p78, %p79
      %p81 = scmp.ne.s32.totalorder %s69, %s70
      %p82 = scmp.eq.s32.totalorder %s18, 1
      %p83 = por %p81, %p82
      %p85 = scmp.ne.s32.totalorder %s70, %s84
      %p86 = scmp.eq.s32.totalorder %s18, 0
      %p87 = por %p85, %p86
      %s88 = ssub.s32 %s12, %s19
      %p89 = scmp.eq.s32.totalorder %s88, 0
      %s91 = sadd.s32 %s90, 1
      %s92 = scalar_select %p89, %s90, %s91
      %p95 = pneg %p89
      %p96 = scmp.eq.s32.totalorder %s12, 1
      %p97 = por %p95, %p96
      %p98 = scmp.ne.s32.totalorder %s90, %s93
      %p99 = scmp.eq.s32.totalorder %s12, 0
      %p100 = por %p98, %p99
      %p101 = scmp.ne.s32.totalorder %s90, %s93
      %p102 = scmp.eq.s32.totalorder %s17, 1
      %p103 = por %p101, %p102
      %p104 = scmp.ne.s32.totalorder %s93, %s94
      %p105 = scmp.eq.s32.totalorder %s17, 0
      %p106 = por %p104, %p105
      %p107 = scmp.ne.s32.totalorder %s93, %s94
      %p108 = scmp.eq.s32.totalorder %s18, 1
      %p109 = por %p107, %p108
      %p111 = scmp.ne.s32.totalorder %s94, %s110
      %p112 = scmp.eq.s32.totalorder %s18, 0
      %p113 = por %p111, %p112
      %p114 = scmp.le.s32.totalorder 1, %s12
      %p115 = scmp.lt.s32.totalorder %s12, 3
      %p116 = pnand %p114, %p115
      %p117 = pneg %p116
      // Predicated region
      $region9: #{tpu_custom_call.1} parent=5 // pred_check
        _
      $region10: #{tpu_custom_call.1} parent=5 // pred_check_branch
        %119 = sbr.rel (%p116) target = $region12
      $region11: #{tpu_custom_call.1} parent=5 // pred_region
        %s120 = ssub.s32 %s12, 1
        // Predicated region
        $region13: #{tpu_custom_call.1} parent=11 // pred_check
          %p121 = pneg %p59
        $region14: #{tpu_custom_call.1} parent=11 // pred_check_branch
          %123 = sbr.rel (%p121) target = $region16
        $region15: #{tpu_custom_call.1} parent=11 // pred_region
          _
        $region16: #{tpu_custom_call.1} parent=11 // pred_fallthru
          _
        // Predicated region
        $region17: #{tpu_custom_call.1} parent=11 // pred_check
          %p124 = pneg %p80
        $region18: #{tpu_custom_call.1} parent=11 // pred_check_branch
          %126 = sbr.rel (%p124) target = $region20
        $region19: #{tpu_custom_call.1} parent=11 // pred_region
          _
        $region20: #{tpu_custom_call.1} parent=11 // pred_fallthru
          _
      $region12: #{tpu_custom_call.1} parent=5 // pred_fallthru
        _
      %p127 = scmp.lt.s32.totalorder %s12, 2
      // Predicated region
      $region21: #{tpu_custom_call.1} parent=5 // pred_check
        %p128 = pneg %p127
      $region22: #{tpu_custom_call.1} parent=5 // pred_check_branch
        %130 = sbr.rel (%p128) target = $region24
      $region23: #{tpu_custom_call.1} parent=5 // pred_region
        // Predicated region
        $region25: #{tpu_custom_call.1} parent=23 // pred_check
          %p131 = pneg %p32
        $region26: #{tpu_custom_call.1} parent=23 // pred_check_branch
          %133 = sbr.rel (%p131) target = $region28
        $region27: #{tpu_custom_call.1} parent=23 // pred_region
          %s134 = smul.u32 4, %s12
          %p135 = scmp.lt.s32.totalorder %s134, 7
          %s136 = scalar_select %p135, %s134, 7
          %s137 = smul.addr %s136, 4
          %s138 = scalar_lea.vmem %s0, %s137
          %s139 = smul.u32 4, %s12
        $region28: #{tpu_custom_call.1} parent=23 // pred_fallthru
          _
      $region24: #{tpu_custom_call.1} parent=5 // pred_fallthru
        _
      %p140 = scmp.le.s32.totalorder 1, %s12
      %p141 = scmp.lt.s32.totalorder %s12, 3
      %p142 = pnand %p140, %p141
      %p143 = pneg %p142
      // Predicated region
      $region29: #{tpu_custom_call.1} parent=5 // pred_check
        _
      $region30: #{tpu_custom_call.1} parent=5 // pred_check_branch
        %145 = sbr.rel (%p142) target = $region32
      $region31: #{tpu_custom_call.1} parent=5 // pred_region
        %s146 = ssub.s32 %s12, 1
        %s147 = smul.u32 4, %s17
        %p148 = scmp.lt.s32.totalorder %s147, 7
        %s149 = scalar_select %p148, %s147, 7
        %s150 = smul.addr %s149, 4
        %s151 = scalar_lea.vmem %s0, %s150
        %p152 = pneg %p38
        %p153 = pneg %p35
        %p154 = pneg %p59
        %p155 = pneg %p56
        %p156 = pneg %p80
        %p157 = pneg %p77
        %p158 = pneg %p106
        %p159 = pneg %p103
        %s160 = sand.u32 %s93, 1
        %s161 = scalar_lea.sflag [#allocation3], %s160
        %s162 = sand.u32 %s93, 1
        %s163 = smul.addr %s162, 16
        %s164 = scalar_lea.vmem [#allocation2], %s163
        %s165 = smul.u32 4, %s17
        %p166 = scmp.lt.s32.totalorder %s165, 7
        %s167 = scalar_select %p166, %s165, 7
        %s168 = smul.addr %s167, 4
        %s169 = scalar_lea.vmem %s0, %s168
        %s170 = smul.u32 4, %s17
        %s171 = smul.u32 4, %s17
        %v173 = vld [vmem:[%s169] sm:$0xf]
        %v174 = vld [vmem:[%s169 + $0x4] sm:$0xf]
        %v175 = vld [vmem:[%s169 + $0x8] sm:$0xf]
        %v176 = vld [vmem:[%s169 + $0xc] sm:$0xf]
        %v177 = vld [vmem:[%s1] sm:$0xf]
        %v178 = vld [vmem:[%s1 + $0x4] sm:$0xf]
        %v179 = vld [vmem:[%s1 + $0x8] sm:$0xf]
        %v180 = vld [vmem:[%s1 + $0xc] sm:$0xf]
        %v181 = vld [vmem:[%s1 + $0x10] sm:$0xf]
        %v182 = vld [vmem:[%s1 + $0x14] sm:$0xf]
        %v183 = vld [vmem:[%s2] sm:$0x1]
        %v185 = vlaneseq
        %v186 = vshrl.u32 %v185, 7
        %v187 = vsub.s32 0, %v186
        %v188 = vrot.slane %v183, %v187
        %v194 = vunpack.c.l.b16 %v173
        %v195 = vunpack.c.l.b16 %v174
        %v196 = vunpack.c.l.b16 %v175
        %v197 = vunpack.c.l.b16 %v176
        %v198 = vpack.c.b16 %v195, %v194
        %v199 = vpack.c.b16 %v197, %v196
        %v206 = vunpack.c.l.b16 %v177
        %v207 = vunpack.c.l.b16 %v178
        %v208 = vunpack.c.l.b16 %v179
        %v209 = vunpack.c.l.b16 %v180
        %v210 = vunpack.c.l.b16 %v181
        %v211 = vunpack.c.l.b16 %v182
        %v212 = vpack.c.b16 %v207, %v206
        %v213 = vpack.c.b16 %v209, %v208
        %v214 = vpack.c.b16 %v211, %v210
        %vm218 = vcmask 392192
        %v220 = vsel %vm218, %v198, 0
        %v223 = vsel %vm218, %v199, 0
        %225 = vmatprep.subr.bf16.mxu0 0
        %226 = vmatpush1.bf16.msra.mxu0 %v212
        %227 = vmatprep.subr.bf16.mxu0 0
        %228 = vmatpush1.bf16.msra.mxu0 %v213
        %229 = vmatprep.subr.bf16.mxu0 0
        %230 = vmatpush1.bf16.msra.mxu0 %v214
        %231 = vmatprep.subr.bf16.mxu0 0
        %232 = vmatpush1.bf16.msra.mxu0 0
        %233 = vmatprep.subr.bf16.mxu0 0
        %234 = vmatpush1.bf16.msra.mxu0 0
        %235 = vmatprep.subr.bf16.mxu0 0
        %236 = vmatpush1.bf16.msra.mxu0 0
        %237 = vmatprep.subr.bf16.mxu0 0
        %238 = vmatpush1.bf16.msra.mxu0 0
        %239 = vmatprep.subr.bf16.mxu0 0
        %240 = vmatpush1.bf16.msra.mxu0 0
        %241 = vmatprep.subr.bf16.mxu0 0
        %242 = vmatpush1.bf16.msra.mxu0 0
        %243 = vmatprep.subr.bf16.mxu0 0
        %244 = vmatpush1.bf16.msra.mxu0 0
        %245 = vmatprep.subr.bf16.mxu0 0
        %246 = vmatpush1.bf16.msra.mxu0 0
        %247 = vmatprep.subr.bf16.mxu0 0
        %248 = vmatpush1.bf16.msra.mxu0 0
        %249 = vmatprep.subr.bf16.mxu0 0
        %250 = vmatpush1.bf16.msra.mxu0 0
        %251 = vmatprep.subr.bf16.mxu0 0
        %252 = vmatpush1.bf16.msra.mxu0 0
        %253 = vmatprep.subr.bf16.mxu0 0
        %254 = vmatpush1.bf16.msra.mxu0 0
        %255 = vmatprep.subr.bf16.mxu0 0
        %256 = vmatpush1.bf16.msra.mxu0 0
        %257 = vmatprep.mubr.bf16.mxu0 0
        %258 = vmatmul.mubr.bf16.gmra.mrb[0].mxu0 %v220
        %v259 = vpop.f32.mrb[0].mxu0
        %v260 = vadd.f32 %v188, %v259
        %v261 = vpop.f32.mrb[0].mxu0
        %v262 = vpop.f32.mrb[0].mxu0
        %v263 = vadd.f32 %v188, %v262
        %v264 = vpop.f32.mrb[0].mxu0
        %265 = vmatprep.mubr.bf16.mxu0 0
        %266 = vmatmul.mubr.bf16.gmra.mrb[0].mxu0 %v223
        %v267 = vpop.f32.mrb[0].mxu0
        %v268 = vadd.f32 %v188, %v267
        %v269 = vpop.f32.mrb[0].mxu0
        %v270 = vpop.f32.mrb[0].mxu0
        %v271 = vadd.f32 %v188, %v270
        %v272 = vpop.f32.mrb[0].mxu0
        %273 = vdwg.mxu0
        %v274 = vmax.f32 %v260, 0.0
        %v275 = vmax.f32 %v263, 0.0
        %v276 = vmax.f32 %v268, 0.0
        %v277 = vmax.f32 %v271, 0.0
        %v278 = vpack.c.bf16 %v275, %v274
        %v279 = vpack.c.bf16 %v277, %v276
        %v282 = vunpack.c.l.b16 %v278
        %v283 = vunpack.c.h.b16 %v278
        %v284 = vunpack.c.l.b16 %v279
        %v285 = vunpack.c.h.b16 %v279
        %v286 = vpack.c.b16 %v282, %v282
        %v287 = vpack.c.b16 %v283, %v283
        %v288 = vpack.c.b16 %v284, %v284
        %v289 = vpack.c.b16 %v285, %v285
        %294 = vst [vmem:[%s164] sm:$0xf] %v286
        %295 = vst [vmem:[%s164 + $0x4] sm:$0xf] %v287
        %296 = vst [vmem:[%s164 + $0x8] sm:$0xf] %v288
        %297 = vst [vmem:[%s164 + $0xc] sm:$0xf] %v289
        %s298 = sand.u32 %s93, 1
        %s299 = scalar_lea.sflag [#allocation3], %s298
        %s300 = sand.u32 %s93, 1
        %s301 = smul.addr %s300, 16
        %s302 = scalar_lea.vmem [#allocation2], %s301
        // Predicated region
        $region33: #{tpu_custom_call.1} parent=31 // pred_check
          %p303 = pneg %p103
        $region34: #{tpu_custom_call.1} parent=31 // pred_check_branch
          %305 = sbr.rel (%p303) target = $region36
        $region35: #{tpu_custom_call.1} parent=31 // pred_region
          %s306 = smul.u32 4, %s17
          %s308 = ssub.s32 256, 256
          %309 = vsyncadd %s299, %s308
          %s310 = smul.addr %s306, 64
          %s311 = scalar_lea.hbm %s3, %s310
          %s312 = sshll.u32 %s302, 4
          %s313 = int_to_ptr.vmem [resolvable:$true] %s312
          %318 = dma.vmem_to_hbm [thread:$0]  %s313, 256, %s311, %s299, 64, 64, 4
        $region36: #{tpu_custom_call.1} parent=31 // pred_fallthru
          _
      $region32: #{tpu_custom_call.1} parent=5 // pred_fallthru
        _
      %p319 = scmp.le.s32.totalorder 2, %s12
      // Predicated region
      $region37: #{tpu_custom_call.1} parent=5 // pred_check
        %p320 = pneg %p319
      $region38: #{tpu_custom_call.1} parent=5 // pred_check_branch
        %322 = sbr.rel (%p320) target = $region40
      $region39: #{tpu_custom_call.1} parent=5 // pred_region
        %s323 = ssub.s32 %s12, 2
        // Predicated region
        $region41: #{tpu_custom_call.1} parent=39 // pred_check
          %p324 = pneg %p109
        $region42: #{tpu_custom_call.1} parent=39 // pred_check_branch
          %326 = sbr.rel (%p324) target = $region44
        $region43: #{tpu_custom_call.1} parent=39 // pred_region
          %s327 = sand.u32 %s94, 1
          %s328 = scalar_lea.sflag [#allocation3], %s327
          %s329 = sand.u32 %s94, 1
          %s330 = smul.addr %s329, 16
          %s331 = scalar_lea.vmem [#allocation2], %s330
          %332 = dma.done %s328, 256
        $region44: #{tpu_custom_call.1} parent=39 // pred_fallthru
          _
      $region40: #{tpu_custom_call.1} parent=5 // pred_fallthru
        _
    $region6: #{tpu_custom_call.1} parent=1 // loop_footer
      %s16 = sadd.s32 1, %s12
    $region7: #{tpu_custom_call.1} parent=1 // loop_footer_branch
      %11 = sbr.rel target = $region3
    $region8: #{tpu_custom_call.1} parent=1 // loop_exit
      _
    %333 = vsyncpa [#allocation3], 1
    %s334 = scalar_lea.sflag [#allocation3], 1
    %335 = vsyncpa %s334, 1

</llo_original>
